<compile_context>
chip_gen: v5e
topology: v5e:2x2
jax: 0.10.0
libtpu: 0.0.40
codegen_flags: <defaults>
</compile_context>

<pallas_src>
import functools

import numpy as np
import jax
import jax.numpy as jnp
from jax.experimental import pallas as pl
from jax.experimental.pallas import tpu as pltpu


def _edc_mse_kernel(xp_ref, xt_ref, out_ref,
                    mask_ref, cp_ref, ct_ref, acc_ref, *, cblk):
    # Grid: (row blocks [parallel], time chunks [arbitrary, last-to-first]).
    k = pl.program_id(1)

    @pl.when(k == 0)
    def _():
        # Loop-invariant lower-triangular ones mask L[j, i] = 1 iff j >= i,
        # built once per row block into persistent VMEM scratch.
        row = jax.lax.broadcasted_iota(jnp.int32, (cblk, cblk), 0)
        col = jax.lax.broadcasted_iota(jnp.int32, (cblk, cblk), 1)
        mask_ref[...] = (row >= col).astype(jnp.float32)
        cp_ref[...] = jnp.zeros_like(cp_ref)       # suffix carry, pred
        ct_ref[...] = jnp.zeros_like(ct_ref)       # suffix carry, true
        acc_ref[...] = jnp.zeros_like(acc_ref)     # sum(diff^2) accumulator

    sp = xp_ref[...].astype(jnp.float32)
    st = xt_ref[...].astype(jnp.float32)
    sp = sp * sp                                   # squared RIR, (Rblk, Cblk)
    st = st * st

    l_mask = mask_ref[...]
    # Within-chunk suffix sums on the MXU: local[r, i] = sum_{j >= i} s[r, j].
    local_p = jnp.dot(sp, l_mask, preferred_element_type=jnp.float32)
    local_t = jnp.dot(st, l_mask, preferred_element_type=jnp.float32)

    cp = cp_ref[...]                               # (Rblk, 1) carried suffix sums
    ct = ct_ref[...]

    eps = jnp.float32(1e-32)
    edc_p = local_p + cp + eps                     # full Schroeder EDC + eps
    edc_t = local_t + ct + eps

    # Carry update is free: column 0 of the local result is the whole-chunk sum.
    cp_ref[...] = local_p[:, 0:1] + cp
    ct_ref[...] = local_t[:, 0:1] + ct

    # 10*log10(p) - 10*log10(t) as (10/ln10)*(ln p - ln t): two EUP logs,
    # no p/t ratio that can overflow f32 when pred has energy where true ~ 0.
    kdb = jnp.float32(10.0 / np.log(10.0))
    diff = kdb * (jnp.log(edc_p) - jnp.log(edc_t))  # (Rblk, Cblk) dB difference

    acc_ref[...] += jnp.sum(diff * diff, axis=0, keepdims=True)   # (1, Cblk)

    @pl.when(k == pl.num_programs(1) - 1)
    def _():
        out_ref[0] = acc_ref[...]


def edc_loss_pallas(y_pred, y_true):
    """Broadband edc_loss forward (normalize=False, clip=False, convergence=False)."""
    assert y_pred.shape == y_true.shape and y_pred.ndim == 3, (
        "y_pred and y_true must have the same shape (n_batch, n_samples, n_channels)")
    B, T, C = y_pred.shape

    # discard_last_n_percent(x, 0.5) -- plain JAX slicing (glue).
    Td = int(np.round((1.0 - 0.5 / 100.0) * T))
    yp = y_pred[:, :Td, :]
    yt = y_true[:, :Td, :]

    # ---- layout plumbing (JAX glue): time on lanes, batch*channel on rows ----
    R = B * C
    yp_rows = jnp.transpose(yp, (0, 2, 1)).reshape(R, Td)
    yt_rows = jnp.transpose(yt, (0, 2, 1)).reshape(R, Td)

    # Time chunking: lane-dense chunks, capped so per-step VMEM (mask + 2x
    # double-buffered input chunks + temporaries) stays a few MiB on all chips.
    Cblk = min(512, ((Td + 127) // 128) * 128)
    Tdp = ((Td + Cblk - 1) // Cblk) * Cblk
    K = Tdp // Cblk                                # number of time chunks

    # Row blocks (sublanes).  Guarantee >=2 blocks when possible so both of
    # v7x's TensorCores get work on the "parallel" axis.
    R8 = ((R + 7) // 8) * 8
    Rblk = min(R8, 128)
    if (R8 + Rblk - 1) // Rblk == 1 and R8 >= 16:
        Rblk = ((R8 // 2 + 7) // 8) * 8
    Rp = ((R8 + Rblk - 1) // Rblk) * Rblk
    G = Rp // Rblk                                 # number of row blocks

    # Zero padding contributes exactly 0 to the loss (identical eps-EDC for
    # pred/true) and does not corrupt the suffix carries.
    yp_rows = jnp.pad(yp_rows, ((0, Rp - R), (0, Tdp - Td)))
    yt_rows = jnp.pad(yt_rows, ((0, Rp - R), (0, Tdp - Td)))

    kernel = functools.partial(_edc_mse_kernel, cblk=Cblk)

    partials = pl.pallas_call(
        kernel,
        out_shape=jax.ShapeDtypeStruct((G, 1, Cblk), jnp.float32),
        grid_spec=pltpu.PrefetchScalarGridSpec(
            num_scalar_prefetch=0,
            grid=(G, K),
            in_specs=[
                # Time chunks streamed last-to-first (reverse cumulative sum).
                pl.BlockSpec((Rblk, Cblk), lambda i, k: (i, K - 1 - k)),
                pl.BlockSpec((Rblk, Cblk), lambda i, k: (i, K - 1 - k)),
            ],
            out_specs=pl.BlockSpec((1, 1, Cblk), lambda i, k: (i, 0, 0)),
            scratch_shapes=[
                pltpu.VMEM((Cblk, Cblk), jnp.float32),   # triangular-ones mask
                pltpu.VMEM((Rblk, 1), jnp.float32),      # suffix carry, pred
                pltpu.VMEM((Rblk, 1), jnp.float32),      # suffix carry, true
                pltpu.VMEM((1, Cblk), jnp.float32),      # sum(diff^2) accumulator
            ]),
        compiler_params=pltpu.CompilerParams(
            dimension_semantics=("parallel", "arbitrary")),
    )(yp_rows, yt_rows)

    inv_count = 1.0 / float(B * Td * C)            # MSELoss(reduction='mean'), unpadded
    return jnp.sum(partials) * jnp.float32(inv_count)


def _edc_ref(x):
    """Pure-JAX reference of get_edc (broadband path)."""
    last_id = int(np.round((1.0 - 0.5 / 100.0) * x.shape[1]))
    x = x[:, :last_id, :]
    out = jnp.flip(jnp.cumsum(jnp.flip(x, axis=1) ** 2, axis=1), axis=1)
    return 10.0 * jnp.log10(out + 1e-32)


def _edc_loss_ref(y_pred, y_true):
    d = _edc_ref(y_pred) - _edc_ref(y_true)
    return jnp.mean(d * d)


if __name__ == "__main__":
    B, T, C = 2, 160, 4  # (n_batch, n_samples, n_channels)
    key = jax.random.PRNGKey(0)
    kp, kt = jax.random.split(key)
    # Synthetic exponentially-decaying "RIR"-like signals.
    t = jnp.arange(T, dtype=jnp.float32)[None, :, None]
    decay = jnp.exp(-t / 40.0)
    y_pred = jax.random.normal(kp, (B, T, C), jnp.float32) * decay
    y_true = jax.random.normal(kt, (B, T, C), jnp.float32) * decay

    loss = jax.block_until_ready(edc_loss_pallas(y_pred, y_true))
    loss_ref = jax.block_until_ready(_edc_loss_ref(y_pred, y_true))

    np.testing.assert_allclose(np.asarray(loss), np.asarray(loss_ref),
                               rtol=1e-3, atol=1e-3)
    print("KERNEL_OK")
</pallas_src>

<mosaic_0001>
module attributes {stable_mosaic.version = 11 : i64} {
  func.func @_edc_mse_kernel(%arg0: i32, %arg1: i32, %arg2: memref<8x256xf32, #tpu.memory_space<vmem>>, %arg3: memref<8x256xf32, #tpu.memory_space<vmem>>, %arg4: memref<1x1x256xf32, #tpu.memory_space<vmem>>, %arg5: memref<256x256xf32, #tpu.memory_space<vmem>>, %arg6: memref<8x1xf32, #tpu.memory_space<vmem>>, %arg7: memref<8x1xf32, #tpu.memory_space<vmem>>, %arg8: memref<1x256xf32, #tpu.memory_space<vmem>>) attributes {dimension_semantics = [#tpu.dimension_semantics<parallel>, #tpu.dimension_semantics<arbitrary>], iteration_bounds = array<i64: 1, 1>, scalar_prefetch = 0 : i64, scratch_operands = 4 : i64, tpu.core_type = #tpu.core_type<tc>, window_params = [{transform_indices = @transform_0, window_bounds = array<i64: 8, 256>}, {transform_indices = @transform_1, window_bounds = array<i64: 8, 256>}, {transform_indices = @transform_2, window_bounds = array<i64: 1, 1, 256>}]} {
    %c0_i32 = arith.constant 0 : i32
    %0 = arith.cmpi eq, %arg1, %c0_i32 : i32
    %1 = arith.extui %0 : i1 to i32
    %c0_i32_0 = arith.constant 0 : i32
    %2 = arith.cmpi ne, %1, %c0_i32_0 : i32
    scf.if %2 {
      %40 = tpu.iota {dimensions = array<i32: 0>} : vector<256x256xi32>
      %41 = tpu.iota {dimensions = array<i32: 1>} : vector<256x256xi32>
      %42 = arith.cmpi sge, %40, %41 : vector<256x256xi32>
      %43 = arith.extui %42 : vector<256x256xi1> to vector<256x256xi32>
      %44 = arith.sitofp %43 : vector<256x256xi32> to vector<256x256xf32>
      %c0_25 = arith.constant 0 : index
      %c0_26 = arith.constant 0 : index
      %45 = vector.load %arg5[%c0_25, %c0_26] : memref<256x256xf32, #tpu.memory_space<vmem>>, vector<256x256xf32>
      tpu.vector_store %arg5[%c0_25, %c0_26], %44 {strides = array<i32>} : memref<256x256xf32, #tpu.memory_space<vmem>>, vector<256x256xf32>,
      %cst_27 = arith.constant 0.000000e+00 : f32
      %46 = vector.broadcast %cst_27 : f32 to vector<8x1xf32>
      %c0_28 = arith.constant 0 : index
      %c0_29 = arith.constant 0 : index
      %47 = vector.load %arg6[%c0_28, %c0_29] : memref<8x1xf32, #tpu.memory_space<vmem>>, vector<8x1xf32>
      tpu.vector_store %arg6[%c0_28, %c0_29], %46 {strides = array<i32>} : memref<8x1xf32, #tpu.memory_space<vmem>>, vector<8x1xf32>,
      %cst_30 = arith.constant 0.000000e+00 : f32
      %48 = vector.broadcast %cst_30 : f32 to vector<8x1xf32>
      %c0_31 = arith.constant 0 : index
      %c0_32 = arith.constant 0 : index
      %49 = vector.load %arg7[%c0_31, %c0_32] : memref<8x1xf32, #tpu.memory_space<vmem>>, vector<8x1xf32>
      tpu.vector_store %arg7[%c0_31, %c0_32], %48 {strides = array<i32>} : memref<8x1xf32, #tpu.memory_space<vmem>>, vector<8x1xf32>,
      %cst_33 = arith.constant 0.000000e+00 : f32
      %50 = vector.broadcast %cst_33 : f32 to vector<1x256xf32>
      %c0_34 = arith.constant 0 : index
      %c0_35 = arith.constant 0 : index
      %51 = vector.load %arg8[%c0_34, %c0_35] : memref<1x256xf32, #tpu.memory_space<vmem>>, vector<1x256xf32>
      tpu.vector_store %arg8[%c0_34, %c0_35], %50 {strides = array<i32>} : memref<1x256xf32, #tpu.memory_space<vmem>>, vector<1x256xf32>,
    } else {
    }
    %c0 = arith.constant 0 : index
    %c0_1 = arith.constant 0 : index
    %3 = vector.load %arg2[%c0, %c0_1] : memref<8x256xf32, #tpu.memory_space<vmem>>, vector<8x256xf32>
    %c0_2 = arith.constant 0 : index
    %c0_3 = arith.constant 0 : index
    %4 = vector.load %arg3[%c0_2, %c0_3] : memref<8x256xf32, #tpu.memory_space<vmem>>, vector<8x256xf32>
    %5 = arith.mulf %3, %3 : vector<8x256xf32>
    %6 = arith.mulf %4, %4 : vector<8x256xf32>
    %c0_4 = arith.constant 0 : index
    %c0_5 = arith.constant 0 : index
    %7 = vector.load %arg5[%c0_4, %c0_5] : memref<256x256xf32, #tpu.memory_space<vmem>>, vector<256x256xf32>
    %cst = arith.constant dense<0.000000e+00> : vector<8x256xf32>
    %8 = tpu.matmul %5, %7, %cst {dimension_numbers = #tpu.dot_dimension_numbers<[1], [0], [0], [1], [0, 0, 1, 1], [], []>} : vector<8x256xf32>, vector<256x256xf32>, vector<8x256xf32> -> vector<8x256xf32>
    %cst_6 = arith.constant dense<0.000000e+00> : vector<8x256xf32>
    %9 = tpu.matmul %6, %7, %cst_6 {dimension_numbers = #tpu.dot_dimension_numbers<[1], [0], [0], [1], [0, 0, 1, 1], [], []>} : vector<8x256xf32>, vector<256x256xf32>, vector<8x256xf32> -> vector<8x256xf32>
    %c0_7 = arith.constant 0 : index
    %c0_8 = arith.constant 0 : index
    %10 = vector.load %arg6[%c0_7, %c0_8] : memref<8x1xf32, #tpu.memory_space<vmem>>, vector<8x1xf32>
    %c0_9 = arith.constant 0 : index
    %c0_10 = arith.constant 0 : index
    %11 = vector.load %arg7[%c0_9, %c0_10] : memref<8x1xf32, #tpu.memory_space<vmem>>, vector<8x1xf32>
    %12 = vector.broadcast %10 : vector<8x1xf32> to vector<8x256xf32>
    %13 = arith.addf %8, %12 : vector<8x256xf32>
    %cst_11 = arith.constant 1.000000e-32 : f32
    %14 = vector.broadcast %cst_11 : f32 to vector<8x256xf32>
    %15 = arith.addf %13, %14 : vector<8x256xf32>
    %16 = vector.broadcast %11 : vector<8x1xf32> to vector<8x256xf32>
    %17 = arith.addf %9, %16 : vector<8x256xf32>
    %cst_12 = arith.constant 1.000000e-32 : f32
    %18 = vector.broadcast %cst_12 : f32 to vector<8x256xf32>
    %19 = arith.addf %17, %18 : vector<8x256xf32>
    %20 = vector.extract_strided_slice %8 {offsets = [0, 0], sizes = [8, 1], strides = [1, 1]} : vector<8x256xf32> to vector<8x1xf32>
    %21 = arith.addf %20, %10 : vector<8x1xf32>
    %c0_13 = arith.constant 0 : index
    %c0_14 = arith.constant 0 : index
    %22 = vector.load %arg6[%c0_13, %c0_14] : memref<8x1xf32, #tpu.memory_space<vmem>>, vector<8x1xf32>
    tpu.vector_store %arg6[%c0_13, %c0_14], %21 {strides = array<i32>} : memref<8x1xf32, #tpu.memory_space<vmem>>, vector<8x1xf32>,
    %23 = vector.extract_strided_slice %9 {offsets = [0, 0], sizes = [8, 1], strides = [1, 1]} : vector<8x256xf32> to vector<8x1xf32>
    %24 = arith.addf %23, %11 : vector<8x1xf32>
    %c0_15 = arith.constant 0 : index
    %c0_16 = arith.constant 0 : index
    %25 = vector.load %arg7[%c0_15, %c0_16] : memref<8x1xf32, #tpu.memory_space<vmem>>, vector<8x1xf32>
    tpu.vector_store %arg7[%c0_15, %c0_16], %24 {strides = array<i32>} : memref<8x1xf32, #tpu.memory_space<vmem>>, vector<8x1xf32>,
    %26 = math.log %15 : vector<8x256xf32>
    %27 = math.log %19 : vector<8x256xf32>
    %28 = arith.subf %26, %27 : vector<8x256xf32>
    %cst_17 = arith.constant 4.34294462 : f32
    %29 = vector.broadcast %cst_17 : f32 to vector<8x256xf32>
    %30 = arith.mulf %29, %28 : vector<8x256xf32>
    %c0_18 = arith.constant 0 : index
    %c0_19 = arith.constant 0 : index
    %31 = vector.load %arg8[%c0_18, %c0_19] : memref<1x256xf32, #tpu.memory_space<vmem>>, vector<1x256xf32>
    %32 = arith.mulf %30, %30 : vector<8x256xf32>
    %cst_20 = arith.constant dense<0.000000e+00> : vector<256xf32>
    %33 = vector.multi_reduction <add>, %32, %cst_20 [0] : vector<8x256xf32> to vector<256xf32>
    %34 = vector.shape_cast %33 : vector<256xf32> to vector<1x256xf32>
    %35 = arith.addf %31, %34 : vector<1x256xf32>
    %c0_21 = arith.constant 0 : index
    %c0_22 = arith.constant 0 : index
    %36 = vector.load %arg8[%c0_21, %c0_22] : memref<1x256xf32, #tpu.memory_space<vmem>>, vector<1x256xf32>
    tpu.vector_store %arg8[%c0_21, %c0_22], %35 {strides = array<i32>} : memref<1x256xf32, #tpu.memory_space<vmem>>, vector<1x256xf32>,
    %c0_i32_23 = arith.constant 0 : i32
    %37 = arith.cmpi eq, %arg1, %c0_i32_23 : i32
    %38 = arith.extui %37 : i1 to i32
    %c0_i32_24 = arith.constant 0 : i32
    %39 = arith.cmpi ne, %38, %c0_i32_24 : i32
    scf.if %39 {
      %c0_25 = arith.constant 0 : index
      %c0_26 = arith.constant 0 : index
      %40 = vector.load %arg8[%c0_25, %c0_26] : memref<1x256xf32, #tpu.memory_space<vmem>>, vector<1x256xf32>
      %c0_27 = arith.constant 0 : index
      %c0_28 = arith.constant 0 : index
      %c0_29 = arith.constant 0 : index
      %41 = vector.load %arg4[%c0_27, %c0_28, %c0_29] : memref<1x1x256xf32, #tpu.memory_space<vmem>>, vector<1x1x256xf32>
      %42 = vector.shape_cast %41 : vector<1x1x256xf32> to vector<1x256xf32>
      %43 = vector.shape_cast %40 : vector<1x256xf32> to vector<1x1x256xf32>
      tpu.vector_store %arg4[%c0_27, %c0_28, %c0_29], %43 {strides = array<i32>} : memref<1x1x256xf32, #tpu.memory_space<vmem>>, vector<1x1x256xf32>,
    } else {
    }
    return
  }
  func.func @transform_0(%arg0: i32, %arg1: i32) -> (i32, i32) {
    %c0_i32 = arith.constant 0 : i32
    %0 = arith.subi %c0_i32, %arg1 : i32
    %c0_i32_0 = arith.constant 0 : i32
    return %arg0, %0 : i32, i32
  }
  func.func @transform_1(%arg0: i32, %arg1: i32) -> (i32, i32) {
    %c0_i32 = arith.constant 0 : i32
    %0 = arith.subi %c0_i32, %arg1 : i32
    %c0_i32_0 = arith.constant 0 : i32
    return %arg0, %0 : i32, i32
  }
  func.func @transform_2(%arg0: i32, %arg1: i32) -> (i32, i32, i32) {
    %c0_i32 = arith.constant 0 : i32
    %c0_i32_0 = arith.constant 0 : i32
    %c0_i32_1 = arith.constant 0 : i32
    return %arg0, %c0_i32, %c0_i32_0 : i32, i32, i32
  }
}

</mosaic_0001>

<llo_original>
// kernel: tpu_custom_call.1
$region0: #{tpu_custom_call.1}
  #allocation0 [shape = 'u32[]', space=smem, size = 0x4, offset = 0x4, fixed_abs, tag = 'smem constant byte address 0x4 - core index']
  #allocation1 [shape = 'u32[72,128]{1,0:T(1,128)}', space=vmem, size = 0x9000, scoped, tag = 'internal scratch']
  #allocation2 [shape = 'f32[256,256]{1,0:T(8,128)}', space=vmem, size = 0x40000, scoped, tag = 'scratch operand']
  #allocation3 [shape = 'f32[8,1]{1,0:T(8,128)}', space=vmem, size = 0x1000, scoped, tag = 'scratch operand']
  #allocation4 [shape = 'f32[8,1]{1,0:T(8,128)}', space=vmem, size = 0x1000, scoped, tag = 'scratch operand']
  #allocation5 [shape = 'f32[1,256]{1,0:T(1,128)}', space=vmem, size = 0x400, scoped, tag = 'scratch operand']
  %s0 = inlined_call_operand.hbm [shape: f32[8,256], index: 0, kind: input, shape index: {}]
  %s1 = inlined_call_operand.hbm [shape: f32[8,256], index: 1, kind: input, shape index: {}]
  %s2 = inlined_call_operand.hbm [shape: f32[1,1,256], index: 2, kind: output, shape index: {}]
  %s3 = sld [smem:[#allocation0]]
  $region34: #{tpu_custom_call.1} parent=0
    _
  %s5 = ssub.s32 1, %s3
  %s6 = scalar_select 0, %s5, %s3
  $region1: #{tpu_custom_call.1} parent=0
    #allocation6 [shape = 'u8[8192]{0}', space=vmem, size = 0x2000, scoped, tag = 'input window, operand 0, single buffered']
    #allocation7 [shape = 's32[1]{0}', space=sflag, size = 0x4, scoped, tag = 'scoped memory for tpu_custom_call.1']
    #allocation8 [shape = 's32[1]{0}', space=sflag, size = 0x4, scoped, tag = 'scoped memory for tpu_custom_call.1']
    #allocation9 [shape = 'u8[8192]{0}', space=vmem, size = 0x2000, scoped, tag = 'input window, operand 1, single buffered']
    #allocation10 [shape = 's32[1]{0}', space=sflag, size = 0x4, scoped, tag = 'scoped memory for tpu_custom_call.1']
    #allocation11 [shape = 'u8[1024]{0}', space=vmem, size = 0x400, scoped, tag = 'output window, operand 0, single buffered']
    %7 = vsyncpa [#allocation7], 0
    %8 = vsyncpa [#allocation10], 0
    %9 = vsyncpa [#allocation8], 0
    // Predicated region
    $region2: #{tpu_custom_call.1} parent=1 // pred_check
      _
    $region3: #{tpu_custom_call.1} parent=1 // pred_check_branch
      %11 = sbr.rel (0) target = $region5
    $region4: #{tpu_custom_call.1} parent=1 // pred_region
      %s12 = ssub.s32 0, 0
      %s13 = smul.u32 2, %s12
      %15 = vsyncadd [#allocation7], 0
      %s16 = smul.addr %s13, 8
      %s17 = scalar_lea.hbm %s0, %s16
      %s19 = sshll.u32 %s17, 4
      %s20 = int_to_ptr.hbm [resolvable:$true] %s19
      %s21 = sshll.u32 [#allocation6], 4
      %s22 = int_to_ptr.vmem [resolvable:$true] %s21
      %24 = dma.hbm_to_vmem [thread:$0]  %s20, 256, %s22, [#allocation7]
    $region5: #{tpu_custom_call.1} parent=1 // pred_fallthru
      _
    // Predicated region
    $region6: #{tpu_custom_call.1} parent=1 // pred_check
      _
    $region7: #{tpu_custom_call.1} parent=1 // pred_check_branch
      %26 = sbr.rel (0) target = $region9
    $region8: #{tpu_custom_call.1} parent=1 // pred_region
      %s27 = ssub.s32 0, 0
      %s28 = smul.u32 2, %s27
      %30 = vsyncadd [#allocation10], 0
      %s31 = smul.addr %s28, 8
      %s32 = scalar_lea.hbm %s1, %s31
      %s34 = sshll.u32 %s32, 4
      %s35 = int_to_ptr.hbm [resolvable:$true] %s34
      %s36 = sshll.u32 [#allocation9], 4
      %s37 = int_to_ptr.vmem [resolvable:$true] %s36
      %39 = dma.hbm_to_vmem [thread:$0]  %s35, 256, %s37, [#allocation10]
    $region9: #{tpu_custom_call.1} parent=1 // pred_fallthru
      _
    // Predicated region
    $region10: #{tpu_custom_call.1} parent=1 // pred_check
      _
    $region11: #{tpu_custom_call.1} parent=1 // pred_check_branch
      %41 = sbr.rel (0) target = $region13
    $region12: #{tpu_custom_call.1} parent=1 // pred_region
      %43 = dma.done [#allocation7], 256
    $region13: #{tpu_custom_call.1} parent=1 // pred_fallthru
      _
    // Predicated region
    $region14: #{tpu_custom_call.1} parent=1 // pred_check
      _
    $region15: #{tpu_custom_call.1} parent=1 // pred_check_branch
      %45 = sbr.rel (0) target = $region17
    $region16: #{tpu_custom_call.1} parent=1 // pred_region
      %47 = dma.done [#allocation10], 256
    $region17: #{tpu_custom_call.1} parent=1 // pred_fallthru
      _
    %s48 = ssub.s32 0, 0
    %s49 = smul.u32 2, %s48
    %s50 = ssub.s32 0, 0
    %s51 = smul.u32 2, %s50
    %p52 = scmp.eq.s32.totalorder 0, 0
    // Predicated region
    $region18: #{tpu_custom_call.1} parent=1 // pred_check
      %p53 = pneg %p52
    $region19: #{tpu_custom_call.1} parent=1 // pred_check_branch
      %55 = sbr.rel (%p53) target = $region21
    $region20: #{tpu_custom_call.1} parent=1 // pred_region
      %v56 = vlaneseq
      %v57 = vshrl.u32 %v56, 7
      %v58 = vadd.s32 %v57, 8
      %v59 = vadd.s32 %v57, 16
      %v60 = vadd.s32 %v57, 24
      %v61 = vadd.s32 %v57, 32
      %v62 = vadd.s32 %v57, 40
      %v63 = vadd.s32 %v57, 48
      %v64 = vadd.s32 %v57, 56
      %v65 = vadd.s32 %v57, 64
      %v66 = vadd.s32 %v57, 72
      %v67 = vadd.s32 %v57, 80
      %v68 = vadd.s32 %v57, 88
      %v69 = vadd.s32 %v57, 96
      %v70 = vadd.s32 %v57, 104
      %v71 = vadd.s32 %v57, 112
      %v72 = vadd.s32 %v57, 120
      %v73 = vadd.s32 %v57, 128
      %v74 = vadd.s32 %v57, 136
      %v75 = vadd.s32 %v57, 144
      %v76 = vadd.s32 %v57, 152
      %v77 = vadd.s32 %v57, 160
      %v78 = vadd.s32 %v57, 168
      %v79 = vadd.s32 %v57, 176
      %v80 = vadd.s32 %v57, 184
      %v81 = vadd.s32 %v57, 192
      %v82 = vadd.s32 %v57, 200
      %v83 = vadd.s32 %v57, 208
      %v84 = vadd.s32 %v57, 216
      %v85 = vadd.s32 %v57, 224
      %v86 = vadd.s32 %v57, 232
      %v87 = vadd.s32 %v57, 240
      %v88 = vadd.s32 %v57, 248
      %v89 = vlaneseq
      %v90 = vand.u32 %v89, 127
      %v91 = vadd.s32 %v90, 128
      %vm92 = vcmp.ge.s32.totalorder %v57, %v90
      %vm93 = vcmp.ge.s32.totalorder %v57, %v91
      %vm94 = vcmp.ge.s32.totalorder %v58, %v90
      %vm95 = vcmp.ge.s32.totalorder %v58, %v91
      %vm96 = vcmp.ge.s32.totalorder %v59, %v90
      %vm97 = vcmp.ge.s32.totalorder %v59, %v91
      %vm98 = vcmp.ge.s32.totalorder %v60, %v90
      %vm99 = vcmp.ge.s32.totalorder %v60, %v91
      %vm100 = vcmp.ge.s32.totalorder %v61, %v90
      %vm101 = vcmp.ge.s32.totalorder %v61, %v91
      %vm102 = vcmp.ge.s32.totalorder %v62, %v90
      %vm103 = vcmp.ge.s32.totalorder %v62, %v91
      %vm104 = vcmp.ge.s32.totalorder %v63, %v90
      %vm105 = vcmp.ge.s32.totalorder %v63, %v91
      %vm106 = vcmp.ge.s32.totalorder %v64, %v90
      %vm107 = vcmp.ge.s32.totalorder %v64, %v91
      %vm108 = vcmp.ge.s32.totalorder %v65, %v90
      %vm109 = vcmp.ge.s32.totalorder %v65, %v91
      %vm110 = vcmp.ge.s32.totalorder %v66, %v90
      %vm111 = vcmp.ge.s32.totalorder %v66, %v91
      %vm112 = vcmp.ge.s32.totalorder %v67, %v90
      %vm113 = vcmp.ge.s32.totalorder %v67, %v91
      %vm114 = vcmp.ge.s32.totalorder %v68, %v90
      %vm115 = vcmp.ge.s32.totalorder %v68, %v91
      %vm116 = vcmp.ge.s32.totalorder %v69, %v90
      %vm117 = vcmp.ge.s32.totalorder %v69, %v91
      %vm118 = vcmp.ge.s32.totalorder %v70, %v90
      %vm119 = vcmp.ge.s32.totalorder %v70, %v91
      %vm120 = vcmp.ge.s32.totalorder %v71, %v90
      %vm121 = vcmp.ge.s32.totalorder %v71, %v91
      %vm122 = vcmp.ge.s32.totalorder %v72, %v90
      %vm123 = vcmp.ge.s32.totalorder %v72, %v91
      %vm124 = vcmp.ge.s32.totalorder %v73, %v90
      %vm125 = vcmp.ge.s32.totalorder %v73, %v91
      %vm126 = vcmp.ge.s32.totalorder %v74, %v90
      %vm127 = vcmp.ge.s32.totalorder %v74, %v91
      %vm128 = vcmp.ge.s32.totalorder %v75, %v90
      %vm129 = vcmp.ge.s32.totalorder %v75, %v91
      %vm130 = vcmp.ge.s32.totalorder %v76, %v90
      %vm131 = vcmp.ge.s32.totalorder %v76, %v91
      %vm132 = vcmp.ge.s32.totalorder %v77, %v90
      %vm133 = vcmp.ge.s32.totalorder %v77, %v91
      %vm134 = vcmp.ge.s32.totalorder %v78, %v90
      %vm135 = vcmp.ge.s32.totalorder %v78, %v91
      %vm136 = vcmp.ge.s32.totalorder %v79, %v90
      %vm137 = vcmp.ge.s32.totalorder %v79, %v91
      %vm138 = vcmp.ge.s32.totalorder %v80, %v90
      %vm139 = vcmp.ge.s32.totalorder %v80, %v91
      %vm140 = vcmp.ge.s32.totalorder %v81, %v90
      %vm141 = vcmp.ge.s32.totalorder %v81, %v91
      %vm142 = vcmp.ge.s32.totalorder %v82, %v90
      %vm143 = vcmp.ge.s32.totalorder %v82, %v91
      %vm144 = vcmp.ge.s32.totalorder %v83, %v90
      %vm145 = vcmp.ge.s32.totalorder %v83, %v91
      %vm146 = vcmp.ge.s32.totalorder %v84, %v90
      %vm147 = vcmp.ge.s32.totalorder %v84, %v91
      %vm148 = vcmp.ge.s32.totalorder %v85, %v90
      %vm149 = vcmp.ge.s32.totalorder %v85, %v91
      %vm150 = vcmp.ge.s32.totalorder %v86, %v90
      %vm151 = vcmp.ge.s32.totalorder %v86, %v91
      %vm152 = vcmp.ge.s32.totalorder %v87, %v90
      %vm153 = vcmp.ge.s32.totalorder %v87, %v91
      %vm154 = vcmp.ge.s32.totalorder %v88, %v90
      %vm155 = vcmp.ge.s32.totalorder %v88, %v91
      %v156 = vsel %vm92, 1, 0
      %v157 = vsel %vm93, 1, 0
      %v158 = vsel %vm94, 1, 0
      %v159 = vsel %vm95, 1, 0
      %v160 = vsel %vm96, 1, 0
      %v161 = vsel %vm97, 1, 0
      %v162 = vsel %vm98, 1, 0
      %v163 = vsel %vm99, 1, 0
      %v164 = vsel %vm100, 1, 0
      %v165 = vsel %vm101, 1, 0
      %v166 = vsel %vm102, 1, 0
      %v167 = vsel %vm103, 1, 0
      %v168 = vsel %vm104, 1, 0
      %v169 = vsel %vm105, 1, 0
      %v170 = vsel %vm106, 1, 0
      %v171 = vsel %vm107, 1, 0
      %v172 = vsel %vm108, 1, 0
      %v173 = vsel %vm109, 1, 0
      %v174 = vsel %vm110, 1, 0
      %v175 = vsel %vm111, 1, 0
      %v176 = vsel %vm112, 1, 0
      %v177 = vsel %vm113, 1, 0
      %v178 = vsel %vm114, 1, 0
      %v179 = vsel %vm115, 1, 0
      %v180 = vsel %vm116, 1, 0
      %v181 = vsel %vm117, 1, 0
      %v182 = vsel %vm118, 1, 0
      %v183 = vsel %vm119, 1, 0
      %v184 = vsel %vm120, 1, 0
      %v185 = vsel %vm121, 1, 0
      %v186 = vsel %vm122, 1, 0
      %v187 = vsel %vm123, 1, 0
      %v188 = vsel %vm124, 1, 0
      %v189 = vsel %vm125, 1, 0
      %v190 = vsel %vm126, 1, 0
      %v191 = vsel %vm127, 1, 0
      %v192 = vsel %vm128, 1, 0
      %v193 = vsel %vm129, 1, 0
      %v194 = vsel %vm130, 1, 0
      %v195 = vsel %vm131, 1, 0
      %v196 = vsel %vm132, 1, 0
      %v197 = vsel %vm133, 1, 0
      %v198 = vsel %vm134, 1, 0
      %v199 = vsel %vm135, 1, 0
      %v200 = vsel %vm136, 1, 0
      %v201 = vsel %vm137, 1, 0
      %v202 = vsel %vm138, 1, 0
      %v203 = vsel %vm139, 1, 0
      %v204 = vsel %vm140, 1, 0
      %v205 = vsel %vm141, 1, 0
      %v206 = vsel %vm142, 1, 0
      %v207 = vsel %vm143, 1, 0
      %v208 = vsel %vm144, 1, 0
      %v209 = vsel %vm145, 1, 0
      %v210 = vsel %vm146, 1, 0
      %v211 = vsel %vm147, 1, 0
      %v212 = vsel %vm148, 1, 0
      %v213 = vsel %vm149, 1, 0
      %v214 = vsel %vm150, 1, 0
      %v215 = vsel %vm151, 1, 0
      %v216 = vsel %vm152, 1, 0
      %v217 = vsel %vm153, 1, 0
      %v218 = vsel %vm154, 1, 0
      %v219 = vsel %vm155, 1, 0
      %v220 = vcvt.s32.f32 %v156
      %v221 = vcvt.s32.f32 %v157
      %v222 = vcvt.s32.f32 %v158
      %v223 = vcvt.s32.f32 %v159
      %v224 = vcvt.s32.f32 %v160
      %v225 = vcvt.s32.f32 %v161
      %v226 = vcvt.s32.f32 %v162
      %v227 = vcvt.s32.f32 %v163
      %v228 = vcvt.s32.f32 %v164
      %v229 = vcvt.s32.f32 %v165
      %v230 = vcvt.s32.f32 %v166
      %v231 = vcvt.s32.f32 %v167
      %v232 = vcvt.s32.f32 %v168
      %v233 = vcvt.s32.f32 %v169
      %v234 = vcvt.s32.f32 %v170
      %v235 = vcvt.s32.f32 %v171
      %v236 = vcvt.s32.f32 %v172
      %v237 = vcvt.s32.f32 %v173
      %v238 = vcvt.s32.f32 %v174
      %v239 = vcvt.s32.f32 %v175
      %v240 = vcvt.s32.f32 %v176
      %v241 = vcvt.s32.f32 %v177
      %v242 = vcvt.s32.f32 %v178
      %v243 = vcvt.s32.f32 %v179
      %v244 = vcvt.s32.f32 %v180
      %v245 = vcvt.s32.f32 %v181
      %v246 = vcvt.s32.f32 %v182
      %v247 = vcvt.s32.f32 %v183
      %v248 = vcvt.s32.f32 %v184
      %v249 = vcvt.s32.f32 %v185
      %v250 = vcvt.s32.f32 %v186
      %v251 = vcvt.s32.f32 %v187
      %v252 = vcvt.s32.f32 %v188
      %v253 = vcvt.s32.f32 %v189
      %v254 = vcvt.s32.f32 %v190
      %v255 = vcvt.s32.f32 %v191
      %v256 = vcvt.s32.f32 %v192
      %v257 = vcvt.s32.f32 %v193
      %v258 = vcvt.s32.f32 %v194
      %v259 = vcvt.s32.f32 %v195
      %v260 = vcvt.s32.f32 %v196
      %v261 = vcvt.s32.f32 %v197
      %v262 = vcvt.s32.f32 %v198
      %v263 = vcvt.s32.f32 %v199
      %v264 = vcvt.s32.f32 %v200
      %v265 = vcvt.s32.f32 %v201
      %v266 = vcvt.s32.f32 %v202
      %v267 = vcvt.s32.f32 %v203
      %v268 = vcvt.s32.f32 %v204
      %v269 = vcvt.s32.f32 %v205
      %v270 = vcvt.s32.f32 %v206
      %v271 = vcvt.s32.f32 %v207
      %v272 = vcvt.s32.f32 %v208
      %v273 = vcvt.s32.f32 %v209
      %v274 = vcvt.s32.f32 %v210
      %v275 = vcvt.s32.f32 %v211
      %v276 = vcvt.s32.f32 %v212
      %v277 = vcvt.s32.f32 %v213
      %v278 = vcvt.s32.f32 %v214
      %v279 = vcvt.s32.f32 %v215
      %v280 = vcvt.s32.f32 %v216
      %v281 = vcvt.s32.f32 %v217
      %v282 = vcvt.s32.f32 %v218
      %v283 = vcvt.s32.f32 %v219
      %284 = vst [vmem:[#allocation2] sm:$0xff] %v220
      %285 = vst [vmem:[#allocation2 + $0x8] sm:$0xff] %v221
      %286 = vst [vmem:[#allocation2 + $0x10] sm:$0xff] %v222
      %287 = vst [vmem:[#allocation2 + $0x18] sm:$0xff] %v223
      %288 = vst [vmem:[#allocation2 + $0x20] sm:$0xff] %v224
      %289 = vst [vmem:[#allocation2 + $0x28] sm:$0xff] %v225
      %290 = vst [vmem:[#allocation2 + $0x30] sm:$0xff] %v226
      %291 = vst [vmem:[#allocation2 + $0x38] sm:$0xff] %v227
      %292 = vst [vmem:[#allocation2 + $0x40] sm:$0xff] %v228
      %293 = vst [vmem:[#allocation2 + $0x48] sm:$0xff] %v229
      %294 = vst [vmem:[#allocation2 + $0x50] sm:$0xff] %v230
      %295 = vst [vmem:[#allocation2 + $0x58] sm:$0xff] %v231
      %296 = vst [vmem:[#allocation2 + $0x60] sm:$0xff] %v232
      %297 = vst [vmem:[#allocation2 + $0x68] sm:$0xff] %v233
      %298 = vst [vmem:[#allocation2 + $0x70] sm:$0xff] %v234
      %299 = vst [vmem:[#allocation2 + $0x78] sm:$0xff] %v235
      %300 = vst [vmem:[#allocation2 + $0x80] sm:$0xff] %v236
      %301 = vst [vmem:[#allocation2 + $0x88] sm:$0xff] %v237
      %302 = vst [vmem:[#allocation2 + $0x90] sm:$0xff] %v238
      %303 = vst [vmem:[#allocation2 + $0x98] sm:$0xff] %v239
      %304 = vst [vmem:[#allocation2 + $0xa0] sm:$0xff] %v240
      %305 = vst [vmem:[#allocation2 + $0xa8] sm:$0xff] %v241
      %306 = vst [vmem:[#allocation2 + $0xb0] sm:$0xff] %v242
      %307 = vst [vmem:[#allocation2 + $0xb8] sm:$0xff] %v243
      %308 = vst [vmem:[#allocation2 + $0xc0] sm:$0xff] %v244
      %309 = vst [vmem:[#allocation2 + $0xc8] sm:$0xff] %v245
      %310 = vst [vmem:[#allocation2 + $0xd0] sm:$0xff] %v246
      %311 = vst [vmem:[#allocation2 + $0xd8] sm:$0xff] %v247
      %312 = vst [vmem:[#allocation2 + $0xe0] sm:$0xff] %v248
      %313 = vst [vmem:[#allocation2 + $0xe8] sm:$0xff] %v249
      %314 = vst [vmem:[#allocation2 + $0xf0] sm:$0xff] %v250
      %315 = vst [vmem:[#allocation2 + $0xf8] sm:$0xff] %v251
      %316 = vst [vmem:[#allocation2 + $0x100] sm:$0xff] %v252
      %317 = vst [vmem:[#allocation2 + $0x108] sm:$0xff] %v253
      %318 = vst [vmem:[#allocation2 + $0x110] sm:$0xff] %v254
      %319 = vst [vmem:[#allocation2 + $0x118] sm:$0xff] %v255
      %320 = vst [vmem:[#allocation2 + $0x120] sm:$0xff] %v256
      %321 = vst [vmem:[#allocation2 + $0x128] sm:$0xff] %v257
      %322 = vst [vmem:[#allocation2 + $0x130] sm:$0xff] %v258
      %323 = vst [vmem:[#allocation2 + $0x138] sm:$0xff] %v259
      %324 = vst [vmem:[#allocation2 + $0x140] sm:$0xff] %v260
      %325 = vst [vmem:[#allocation2 + $0x148] sm:$0xff] %v261
      %326 = vst [vmem:[#allocation2 + $0x150] sm:$0xff] %v262
      %327 = vst [vmem:[#allocation2 + $0x158] sm:$0xff] %v263
      %328 = vst [vmem:[#allocation2 + $0x160] sm:$0xff] %v264
      %329 = vst [vmem:[#allocation2 + $0x168] sm:$0xff] %v265
      %330 = vst [vmem:[#allocation2 + $0x170] sm:$0xff] %v266
      %331 = vst [vmem:[#allocation2 + $0x178] sm:$0xff] %v267
      %332 = vst [vmem:[#allocation2 + $0x180] sm:$0xff] %v268
      %333 = vst [vmem:[#allocation2 + $0x188] sm:$0xff] %v269
      %334 = vst [vmem:[#allocation2 + $0x190] sm:$0xff] %v270
      %335 = vst [vmem:[#allocation2 + $0x198] sm:$0xff] %v271
      %336 = vst [vmem:[#allocation2 + $0x1a0] sm:$0xff] %v272
      %337 = vst [vmem:[#allocation2 + $0x1a8] sm:$0xff] %v273
      %338 = vst [vmem:[#allocation2 + $0x1b0] sm:$0xff] %v274
      %339 = vst [vmem:[#allocation2 + $0x1b8] sm:$0xff] %v275
      %340 = vst [vmem:[#allocation2 + $0x1c0] sm:$0xff] %v276
      %341 = vst [vmem:[#allocation2 + $0x1c8] sm:$0xff] %v277
      %342 = vst [vmem:[#allocation2 + $0x1d0] sm:$0xff] %v278
      %343 = vst [vmem:[#allocation2 + $0x1d8] sm:$0xff] %v279
      %344 = vst [vmem:[#allocation2 + $0x1e0] sm:$0xff] %v280
      %345 = vst [vmem:[#allocation2 + $0x1e8] sm:$0xff] %v281
      %346 = vst [vmem:[#allocation2 + $0x1f0] sm:$0xff] %v282
      %347 = vst [vmem:[#allocation2 + $0x1f8] sm:$0xff] %v283
      %vm348 = vcmask 7168
      %349 = vst.msk [vmem:[#allocation3] sm:$0xff] %vm348, 0.0
      %350 = vst.msk [vmem:[#allocation4] sm:$0xff] %vm348, 0.0
      %v351 = vlaneseq
      %vm352 = vcmp.ge.s32.totalorder %v351, 0
      %vm353 = vcmp.lt.s32.totalorder %v351, 256
      %vm354 = vmand %vm352, %vm353
      %355 = vst.msk [vmem:[#allocation5] sm:$0x3] %vm354, 0.0
    $region21: #{tpu_custom_call.1} parent=1 // pred_fallthru
      _
    %v356 = vld [vmem:[#allocation6] sm:$0xff]
    %v357 = vld [vmem:[#allocation6 + $0x8] sm:$0xff]
    %v358 = vld [vmem:[#allocation9] sm:$0xff]
    %v359 = vld [vmem:[#allocation9 + $0x8] sm:$0xff]
    %v360 = vmul.f32 %v356, %v356
    %v361 = vmul.f32 %v357, %v357
    %v362 = vmul.f32 %v358, %v358
    %v363 = vmul.f32 %v359, %v359
    %v364 = vld [vmem:[#allocation2] sm:$0xff]
    %v365 = vld [vmem:[#allocation2 + $0x8] sm:$0xff]
    %v366 = vld [vmem:[#allocation2 + $0x10] sm:$0xff]
    %v367 = vld [vmem:[#allocation2 + $0x18] sm:$0xff]
    %v368 = vld [vmem:[#allocation2 + $0x20] sm:$0xff]
    %v369 = vld [vmem:[#allocation2 + $0x28] sm:$0xff]
    %v370 = vld [vmem:[#allocation2 + $0x30] sm:$0xff]
    %v371 = vld [vmem:[#allocation2 + $0x38] sm:$0xff]
    %v372 = vld [vmem:[#allocation2 + $0x40] sm:$0xff]
    %v373 = vld [vmem:[#allocation2 + $0x48] sm:$0xff]
    %v374 = vld [vmem:[#allocation2 + $0x50] sm:$0xff]
    %v375 = vld [vmem:[#allocation2 + $0x58] sm:$0xff]
    %v376 = vld [vmem:[#allocation2 + $0x60] sm:$0xff]
    %v377 = vld [vmem:[#allocation2 + $0x68] sm:$0xff]
    %v378 = vld [vmem:[#allocation2 + $0x70] sm:$0xff]
    %v379 = vld [vmem:[#allocation2 + $0x78] sm:$0xff]
    %v380 = vld [vmem:[#allocation2 + $0x80] sm:$0xff]
    %v381 = vld [vmem:[#allocation2 + $0x88] sm:$0xff]
    %v382 = vld [vmem:[#allocation2 + $0x90] sm:$0xff]
    %v383 = vld [vmem:[#allocation2 + $0x98] sm:$0xff]
    %v384 = vld [vmem:[#allocation2 + $0xa0] sm:$0xff]
    %v385 = vld [vmem:[#allocation2 + $0xa8] sm:$0xff]
    %v386 = vld [vmem:[#allocation2 + $0xb0] sm:$0xff]
    %v387 = vld [vmem:[#allocation2 + $0xb8] sm:$0xff]
    %v388 = vld [vmem:[#allocation2 + $0xc0] sm:$0xff]
    %v389 = vld [vmem:[#allocation2 + $0xc8] sm:$0xff]
    %v390 = vld [vmem:[#allocation2 + $0xd0] sm:$0xff]
    %v391 = vld [vmem:[#allocation2 + $0xd8] sm:$0xff]
    %v392 = vld [vmem:[#allocation2 + $0xe0] sm:$0xff]
    %v393 = vld [vmem:[#allocation2 + $0xe8] sm:$0xff]
    %v394 = vld [vmem:[#allocation2 + $0xf0] sm:$0xff]
    %v395 = vld [vmem:[#allocation2 + $0xf8] sm:$0xff]
    %v396 = vld [vmem:[#allocation2 + $0x100] sm:$0xff]
    %v397 = vld [vmem:[#allocation2 + $0x108] sm:$0xff]
    %v398 = vld [vmem:[#allocation2 + $0x110] sm:$0xff]
    %v399 = vld [vmem:[#allocation2 + $0x118] sm:$0xff]
    %v400 = vld [vmem:[#allocation2 + $0x120] sm:$0xff]
    %v401 = vld [vmem:[#allocation2 + $0x128] sm:$0xff]
    %v402 = vld [vmem:[#allocation2 + $0x130] sm:$0xff]
    %v403 = vld [vmem:[#allocation2 + $0x138] sm:$0xff]
    %v404 = vld [vmem:[#allocation2 + $0x140] sm:$0xff]
    %v405 = vld [vmem:[#allocation2 + $0x148] sm:$0xff]
    %v406 = vld [vmem:[#allocation2 + $0x150] sm:$0xff]
    %v407 = vld [vmem:[#allocation2 + $0x158] sm:$0xff]
    %v408 = vld [vmem:[#allocation2 + $0x160] sm:$0xff]
    %v409 = vld [vmem:[#allocation2 + $0x168] sm:$0xff]
    %v410 = vld [vmem:[#allocation2 + $0x170] sm:$0xff]
    %v411 = vld [vmem:[#allocation2 + $0x178] sm:$0xff]
    %v412 = vld [vmem:[#allocation2 + $0x180] sm:$0xff]
    %v413 = vld [vmem:[#allocation2 + $0x188] sm:$0xff]
    %v414 = vld [vmem:[#allocation2 + $0x190] sm:$0xff]
    %v415 = vld [vmem:[#allocation2 + $0x198] sm:$0xff]
    %v416 = vld [vmem:[#allocation2 + $0x1a0] sm:$0xff]
    %v417 = vld [vmem:[#allocation2 + $0x1a8] sm:$0xff]
    %v418 = vld [vmem:[#allocation2 + $0x1b0] sm:$0xff]
    %v419 = vld [vmem:[#allocation2 + $0x1b8] sm:$0xff]
    %v420 = vld [vmem:[#allocation2 + $0x1c0] sm:$0xff]
    %v421 = vld [vmem:[#allocation2 + $0x1c8] sm:$0xff]
    %v422 = vld [vmem:[#allocation2 + $0x1d0] sm:$0xff]
    %v423 = vld [vmem:[#allocation2 + $0x1d8] sm:$0xff]
    %v424 = vld [vmem:[#allocation2 + $0x1e0] sm:$0xff]
    %v425 = vld [vmem:[#allocation2 + $0x1e8] sm:$0xff]
    %v426 = vld [vmem:[#allocation2 + $0x1f0] sm:$0xff]
    %v427 = vld [vmem:[#allocation2 + $0x1f8] sm:$0xff]
    %428 = vmatpush.msra.mxu0 %v394
    %429 = vmatpush.msra.mxu0 %v392
    %430 = vmatpush.msra.mxu0 %v390
    %431 = vmatpush.msra.mxu0 %v388
    %432 = vmatpush.msra.mxu0 %v386
    %433 = vmatpush.msra.mxu0 %v384
    %434 = vmatpush.msra.mxu0 %v382
    %435 = vmatpush.msra.mxu0 %v380
    %436 = vmatpush.msra.mxu0 %v378
    %437 = vmatpush.msra.mxu0 %v376
    %438 = vmatpush.msra.mxu0 %v374
    %439 = vmatpush.msra.mxu0 %v372
    %440 = vmatpush.msra.mxu0 %v370
    %441 = vmatpush.msra.mxu0 %v368
    %442 = vmatpush.msra.mxu0 %v366
    %443 = vmatpush.msra.mxu0 %v364
    %444 = vmatmul.f32.gmra.mxu0 %v360
    %v445 = vpop.f32.mrf.mxu0
    %v446 = vadd.f32 0.0, %v445
    %447 = vdwg.mxu0
    %448 = vmatpush.msra.mxu0 %v426
    %449 = vmatpush.msra.mxu0 %v424
    %450 = vmatpush.msra.mxu0 %v422
    %451 = vmatpush.msra.mxu0 %v420
    %452 = vmatpush.msra.mxu0 %v418
    %453 = vmatpush.msra.mxu0 %v416
    %454 = vmatpush.msra.mxu0 %v414
    %455 = vmatpush.msra.mxu0 %v412
    %456 = vmatpush.msra.mxu0 %v410
    %457 = vmatpush.msra.mxu0 %v408
    %458 = vmatpush.msra.mxu0 %v406
    %459 = vmatpush.msra.mxu0 %v404
    %460 = vmatpush.msra.mxu0 %v402
    %461 = vmatpush.msra.mxu0 %v400
    %462 = vmatpush.msra.mxu0 %v398
    %463 = vmatpush.msra.mxu0 %v396
    %464 = vmatmul.f32.gmra.mxu0 %v361
    %v465 = vpop.f32.mrf.mxu0
    %v466 = vadd.f32 %v446, %v465
    %467 = vdwg.mxu0
    %468 = vmatpush.msra.mxu0 %v395
    %469 = vmatpush.msra.mxu0 %v393
    %470 = vmatpush.msra.mxu0 %v391
    %471 = vmatpush.msra.mxu0 %v389
    %472 = vmatpush.msra.mxu0 %v387
    %473 = vmatpush.msra.mxu0 %v385
    %474 = vmatpush.msra.mxu0 %v383
    %475 = vmatpush.msra.mxu0 %v381
    %476 = vmatpush.msra.mxu0 %v379
    %477 = vmatpush.msra.mxu0 %v377
    %478 = vmatpush.msra.mxu0 %v375
    %479 = vmatpush.msra.mxu0 %v373
    %480 = vmatpush.msra.mxu0 %v371
    %481 = vmatpush.msra.mxu0 %v369
    %482 = vmatpush.msra.mxu0 %v367
    %483 = vmatpush.msra.mxu0 %v365
    %484 = vmatmul.f32.gmra.mxu0 %v360
    %v485 = vpop.f32.mrf.mxu0
    %v486 = vadd.f32 0.0, %v485
    %487 = vdwg.mxu0
    %488 = vmatpush.msra.mxu0 %v427
    %489 = vmatpush.msra.mxu0 %v425
    %490 = vmatpush.msra.mxu0 %v423
    %491 = vmatpush.msra.mxu0 %v421
    %492 = vmatpush.msra.mxu0 %v419
    %493 = vmatpush.msra.mxu0 %v417
    %494 = vmatpush.msra.mxu0 %v415
    %495 = vmatpush.msra.mxu0 %v413
    %496 = vmatpush.msra.mxu0 %v411
    %497 = vmatpush.msra.mxu0 %v409
    %498 = vmatpush.msra.mxu0 %v407
    %499 = vmatpush.msra.mxu0 %v405
    %500 = vmatpush.msra.mxu0 %v403
    %501 = vmatpush.msra.mxu0 %v401
    %502 = vmatpush.msra.mxu0 %v399
    %503 = vmatpush.msra.mxu0 %v397
    %504 = vmatmul.f32.gmra.mxu0 %v361
    %v505 = vpop.f32.mrf.mxu0
    %v506 = vadd.f32 %v486, %v505
    %507 = vdwg.mxu0
    %508 = vmatpush.msra.mxu0 %v394
    %509 = vmatpush.msra.mxu0 %v392
    %510 = vmatpush.msra.mxu0 %v390
    %511 = vmatpush.msra.mxu0 %v388
    %512 = vmatpush.msra.mxu0 %v386
    %513 = vmatpush.msra.mxu0 %v384
    %514 = vmatpush.msra.mxu0 %v382
    %515 = vmatpush.msra.mxu0 %v380
    %516 = vmatpush.msra.mxu0 %v378
    %517 = vmatpush.msra.mxu0 %v376
    %518 = vmatpush.msra.mxu0 %v374
    %519 = vmatpush.msra.mxu0 %v372
    %520 = vmatpush.msra.mxu0 %v370
    %521 = vmatpush.msra.mxu0 %v368
    %522 = vmatpush.msra.mxu0 %v366
    %523 = vmatpush.msra.mxu0 %v364
    %524 = vmatmul.f32.gmra.mxu0 %v362
    %v525 = vpop.f32.mrf.mxu0
    %v526 = vadd.f32 0.0, %v525
    %527 = vdwg.mxu0
    %528 = vmatpush.msra.mxu0 %v426
    %529 = vmatpush.msra.mxu0 %v424
    %530 = vmatpush.msra.mxu0 %v422
    %531 = vmatpush.msra.mxu0 %v420
    %532 = vmatpush.msra.mxu0 %v418
    %533 = vmatpush.msra.mxu0 %v416
    %534 = vmatpush.msra.mxu0 %v414
    %535 = vmatpush.msra.mxu0 %v412
    %536 = vmatpush.msra.mxu0 %v410
    %537 = vmatpush.msra.mxu0 %v408
    %538 = vmatpush.msra.mxu0 %v406
    %539 = vmatpush.msra.mxu0 %v404
    %540 = vmatpush.msra.mxu0 %v402
    %541 = vmatpush.msra.mxu0 %v400
    %542 = vmatpush.msra.mxu0 %v398
    %543 = vmatpush.msra.mxu0 %v396
    %544 = vmatmul.f32.gmra.mxu0 %v363
    %v545 = vpop.f32.mrf.mxu0
    %v546 = vadd.f32 %v526, %v545
    %547 = vdwg.mxu0
    %548 = vmatpush.msra.mxu0 %v395
    %549 = vmatpush.msra.mxu0 %v393
    %550 = vmatpush.msra.mxu0 %v391
    %551 = vmatpush.msra.mxu0 %v389
    %552 = vmatpush.msra.mxu0 %v387
    %553 = vmatpush.msra.mxu0 %v385
    %554 = vmatpush.msra.mxu0 %v383
    %555 = vmatpush.msra.mxu0 %v381
    %556 = vmatpush.msra.mxu0 %v379
    %557 = vmatpush.msra.mxu0 %v377
    %558 = vmatpush.msra.mxu0 %v375
    %559 = vmatpush.msra.mxu0 %v373
    %560 = vmatpush.msra.mxu0 %v371
    %561 = vmatpush.msra.mxu0 %v369
    %562 = vmatpush.msra.mxu0 %v367
    %563 = vmatpush.msra.mxu0 %v365
    %564 = vmatmul.f32.gmra.mxu0 %v362
    %v565 = vpop.f32.mrf.mxu0
    %v566 = vadd.f32 0.0, %v565
    %567 = vdwg.mxu0
    %568 = vmatpush.msra.mxu0 %v427
    %569 = vmatpush.msra.mxu0 %v425
    %570 = vmatpush.msra.mxu0 %v423
    %571 = vmatpush.msra.mxu0 %v421
    %572 = vmatpush.msra.mxu0 %v419
    %573 = vmatpush.msra.mxu0 %v417
    %574 = vmatpush.msra.mxu0 %v415
    %575 = vmatpush.msra.mxu0 %v413
    %576 = vmatpush.msra.mxu0 %v411
    %577 = vmatpush.msra.mxu0 %v409
    %578 = vmatpush.msra.mxu0 %v407
    %579 = vmatpush.msra.mxu0 %v405
    %580 = vmatpush.msra.mxu0 %v403
    %581 = vmatpush.msra.mxu0 %v401
    %582 = vmatpush.msra.mxu0 %v399
    %583 = vmatpush.msra.mxu0 %v397
    %584 = vmatmul.f32.gmra.mxu0 %v363
    %v585 = vpop.f32.mrf.mxu0
    %v586 = vadd.f32 %v566, %v585
    %587 = vdwg.mxu0
    %v588 = vld [vmem:[#allocation3] sm:$0xff]
    %v589 = vld [vmem:[#allocation4] sm:$0xff]
    %591 = vset.pattern.permute.xlu0 0
    %592 = vperm.xlu0 %591, %v588
    %v593 = vpop.permute.xlu0 %592
    %v595 = vadd.f32 %v466, %v593
    %v596 = vadd.f32 %v506, %v593
    %v597 = vadd.f32 %v595, 1e-32
    %v598 = vadd.f32 %v596, 1e-32
    %600 = vset.pattern.permute.xlu0 0
    %601 = vperm.xlu0 %600, %v589
    %v602 = vpop.permute.xlu0 %601
    %v604 = vadd.f32 %v546, %v602
    %v605 = vadd.f32 %v586, %v602
    %v606 = vadd.f32 %v604, 1e-32
    %v607 = vadd.f32 %v605, 1e-32
    %v608 = vadd.f32 %v466, %v588
    %vm609 = vcmask 7168
    %610 = vst.msk [vmem:[#allocation3] sm:$0xff] %vm609, %v608
    %v611 = vadd.f32 %v546, %v589
    %612 = vst.msk [vmem:[#allocation4] sm:$0xff] %vm609, %v611
    %v613 = vlog2.pop %v597
    %v614 = vmul.f32 %v613, 0.6931472
    %v615 = vlog2.pop %v598
    %v616 = vmul.f32 %v615, 0.6931472
    %v617 = vlog2.pop %v606
    %v618 = vmul.f32 %v617, 0.6931472
    %v619 = vlog2.pop %v607
    %v620 = vmul.f32 %v619, 0.6931472
    %v621 = vsub.f32 %v614, %v618
    %v622 = vsub.f32 %v616, %v620
    %v623 = vmul.f32 %v621, 4.3429446
    %v624 = vmul.f32 %v622, 4.3429446
    %v625 = vld [vmem:[#allocation5] sm:$0x3]
    %v626 = vmul.f32 %v623, %v623
    %v627 = vmul.f32 %v624, %v624
    %v628 = vrot.slane %v626, 4
    %v629 = vadd.f32 %v626, %v628
    %v630 = vrot.slane %v629, 2
    %v631 = vadd.f32 %v629, %v630
    %v632 = vrot.slane %v631, 1
    %v633 = vadd.f32 %v631, %v632
    %v634 = vrot.slane %v627, 4
    %v635 = vadd.f32 %v627, %v634
    %v636 = vrot.slane %v635, 2
    %v637 = vadd.f32 %v635, %v636
    %v638 = vrot.slane %v637, 1
    %v639 = vadd.f32 %v637, %v638
    %v642 = vrot.slane %v639, 7
    %vm643 = vcmask 1040384
    %v644 = vsel %vm643, %v633, %v642
    %v646 = vadd.f32 %v625, %v644
    %v647 = vlaneseq
    %vm648 = vcmp.ge.s32.totalorder %v647, 0
    %vm649 = vcmp.lt.s32.totalorder %v647, 256
    %vm650 = vmand %vm648, %vm649
    %651 = vst.msk [vmem:[#allocation5] sm:$0x3] %vm650, %v646
    // Predicated region
    $region22: #{tpu_custom_call.1} parent=1 // pred_check
      %p652 = pneg %p52
    $region23: #{tpu_custom_call.1} parent=1 // pred_check_branch
      %654 = sbr.rel (%p652) target = $region25
    $region24: #{tpu_custom_call.1} parent=1 // pred_region
      %v655 = vld [vmem:[#allocation5] sm:$0x3]
      %656 = vst.msk [vmem:[#allocation11] sm:$0x3] %vm650, %v655
    $region25: #{tpu_custom_call.1} parent=1 // pred_fallthru
      _
    // Predicated region
    $region26: #{tpu_custom_call.1} parent=1 // pred_check
      _
    $region27: #{tpu_custom_call.1} parent=1 // pred_check_branch
      %658 = sbr.rel (0) target = $region29
    $region28: #{tpu_custom_call.1} parent=1 // pred_region
      %660 = vsyncadd [#allocation8], 0
      %s662 = sshll.u32 [#allocation11], 4
      %s663 = int_to_ptr.vmem [resolvable:$true] %s662
      %s664 = sshll.u32 %s2, 4
      %s665 = int_to_ptr.hbm [resolvable:$true] %s664
      %667 = dma.vmem_to_hbm [thread:$0]  %s663, 32, %s665, [#allocation8]
    $region29: #{tpu_custom_call.1} parent=1 // pred_fallthru
      _
    // Predicated region
    $region30: #{tpu_custom_call.1} parent=1 // pred_check
      _
    $region31: #{tpu_custom_call.1} parent=1 // pred_check_branch
      %669 = sbr.rel (0) target = $region33
    $region32: #{tpu_custom_call.1} parent=1 // pred_region
      %671 = dma.done [#allocation8], 32
    $region33: #{tpu_custom_call.1} parent=1 // pred_fallthru
      _
    %672 = vsyncpa [#allocation7], 1
    %673 = vsyncpa [#allocation10], 1
    %674 = vsyncpa [#allocation8], 1

</llo_original>
